<compile_context>
chip_gen: v5e
topology: v5e:2x2
jax: 0.10.0
libtpu: 0.0.40
codegen_flags: <defaults>
</compile_context>

<pallas_src>
import jax
import jax.numpy as jnp
from jax.experimental import pallas as pl
from jax.experimental.pallas import tpu as pltpu


def _round_up(x, m):
    return (x + m - 1) // m * m


def _critic_kernel(h_ref, z_ref, a_ref,
                   w1h_ref, w1z_ref, w1a_ref, b1_ref,
                   w2_ref, b2_ref, w3r_ref, b3_ref, o_ref):
    # ---- layer 1: split-K matmul over the [h, z, action] chunks (no concat) ----
    acc = jnp.dot(h_ref[...], w1h_ref[...], preferred_element_type=jnp.float32)
    acc = acc + jnp.dot(z_ref[...], w1z_ref[...], preferred_element_type=jnp.float32)
    acc = acc + jnp.dot(a_ref[...], w1a_ref[...], preferred_element_type=jnp.float32)
    h1 = acc + b1_ref[...]                      # f32 bias add
    h1 = h1 * jax.nn.sigmoid(h1)                # SiLU in f32 (EUP; safe on v5e too)

    # ---- layer 2: bf16 MXU matmul, f32 accumulate ----
    h2 = jnp.dot(h1.astype(jnp.bfloat16), w2_ref[...],
                 preferred_element_type=jnp.float32) + b2_ref[...]
    h2 = h2 * jax.nn.sigmoid(h2)                # SiLU in f32

    # ---- layer 3 (out_features = 1): lane reduction, no 1-lane MXU pass ----
    out = jnp.sum(h2 * w3r_ref[...], axis=-1, keepdims=True) + b3_ref[0]
    o_ref[...] = out.astype(o_ref.dtype)        # (TB, 1)


def critic_forward(h, z, action, kparams):
    """h:(B,Dh) z:(B,Dz) action:(B,Da) f32; kparams from prepare_params()."""
    w1h, w1z, w1a, b1, w2, b2, w3r, b3 = kparams
    B, Dh = h.shape
    Dz = z.shape[1]
    Da = action.shape[1]
    H1 = w2.shape[0]
    H2 = w2.shape[1]

    # batch tiling: multiple of 8 rows, capped at 256 rows per block
    TB = 256 if B >= 256 else _round_up(B, 8)
    B_pad = _round_up(B, TB)

    hb = h.astype(jnp.bfloat16)
    zb = z.astype(jnp.bfloat16)
    ab = action.astype(jnp.bfloat16)
    if B_pad != B:
        pad = ((0, B_pad - B), (0, 0))
        hb = jnp.pad(hb, pad)
        zb = jnp.pad(zb, pad)
        ab = jnp.pad(ab, pad)

    d_in = Dh + Dz + Da
    flops = 2 * B_pad * (d_in * H1 + H1 * H2 + H2)
    transcendentals = 2 * B_pad * H1
    bytes_accessed = (B_pad * d_in * 2                # bf16 activations in
                      + (d_in * H1 + H1 * H2) * 2     # bf16 weights
                      + (H1 + H2 + H2 + 1) * 4        # f32 biases + w3 row
                      + B_pad * 4)                    # f32 output

    row = lambda i: (i, 0)        # batch-tiled operands
    rep = lambda i: (0, 0)        # weights/biases stay VMEM-resident

    out = pl.pallas_call(
        _critic_kernel,
        out_shape=jax.ShapeDtypeStruct((B_pad, 1), jnp.float32),
        grid=(B_pad // TB,),
        in_specs=[
            pl.BlockSpec((TB, Dh), row),
            pl.BlockSpec((TB, Dz), row),
            pl.BlockSpec((TB, Da), row),
            pl.BlockSpec((Dh, H1), rep),
            pl.BlockSpec((Dz, H1), rep),
            pl.BlockSpec((Da, H1), rep),
            pl.BlockSpec((1, H1), rep),
            pl.BlockSpec((H1, H2), rep),
            pl.BlockSpec((1, H2), rep),
            pl.BlockSpec((1, H2), rep),
            pl.BlockSpec(memory_space=pltpu.MemorySpace.SMEM),   # b3 scalar
        ],
        out_specs=pl.BlockSpec((TB, 1), row),
        compiler_params=pltpu.CompilerParams(
            dimension_semantics=("parallel",)),
        cost_estimate=pl.CostEstimate(
            flops=flops,
            transcendentals=transcendentals,
            bytes_accessed=bytes_accessed),
    )(hb, zb, ab, w1h, w1z, w1a, b1, w2, b2, w3r, b3)

    return out[:B]


critic_forward = jax.jit(critic_forward)


def init_params(key, d_in, h1=256, h2=256, d_out=1):
    """Deterministic Linear-layer init (uniform, PyTorch-style bounds), f32."""
    ks = jax.random.split(key, 6)

    def lin(kw, kb, fan_in, fan_out):
        bound = 1.0 / (fan_in ** 0.5)
        w = jax.random.uniform(kw, (fan_in, fan_out), jnp.float32, -bound, bound)
        b = jax.random.uniform(kb, (fan_out,), jnp.float32, -bound, bound)
        return w, b

    w1, b1 = lin(ks[0], ks[1], d_in, h1)
    w2, b2 = lin(ks[2], ks[3], h1, h2)
    w3, b3 = lin(ks[4], ks[5], h2, d_out)
    return (w1, b1, w2, b2, w3, b3)


def prepare_params(params, hidden_dim, categorical_dim, action_dim):
    """One-time conversion to the kernel layout: bf16 weights, split w1, f32 rest."""
    w1, b1, w2, b2, w3, b3 = params
    Dh, Dz = hidden_dim, categorical_dim
    w1h = w1[:Dh].astype(jnp.bfloat16)
    w1z = w1[Dh:Dh + Dz].astype(jnp.bfloat16)
    w1a = w1[Dh + Dz:].astype(jnp.bfloat16)
    return (w1h, w1z, w1a,
            b1.reshape(1, -1).astype(jnp.float32),
            w2.astype(jnp.bfloat16),
            b2.reshape(1, -1).astype(jnp.float32),
            w3.reshape(1, -1).astype(jnp.float32),   # (1, H2) row for lane-reduce
            b3.reshape(1).astype(jnp.float32))       # scalar, goes to SMEM


def reference_forward(h, z, action, params):
    w1, b1, w2, b2, w3, b3 = params
    x = jnp.concatenate([h, z, action], axis=-1)
    y = jax.nn.silu(x @ w1 + b1)
    y = jax.nn.silu(y @ w2 + b2)
    return y @ w3 + b3


if __name__ == "__main__":
    # Small, module-consistent shapes:
    #   hidden_dim=32, num_categorical=4, class_size=8 -> categorical_dim=32,
    #   action_dim=6 (free global in the PyTorch spec), batch=8.
    batch = 8
    hidden_dim = 32
    num_categorical = 4
    class_size = 8
    categorical_dim = num_categorical * class_size
    action_dim = 6
    d_in = hidden_dim + categorical_dim + action_dim

    key = jax.random.PRNGKey(0)
    k_h, k_z, k_a, k_p = jax.random.split(key, 4)
    h = jax.random.normal(k_h, (batch, hidden_dim), jnp.float32)
    z = jax.random.normal(k_z, (batch, categorical_dim), jnp.float32)
    action = jax.random.normal(k_a, (batch, action_dim), jnp.float32)

    params = init_params(k_p, d_in)
    kparams = prepare_params(params, hidden_dim, categorical_dim, action_dim)

    out = critic_forward(h, z, action, kparams)
    out = jax.block_until_ready(out)

    ref = reference_forward(h, z, action, params)
    assert out.shape == (batch, 1)
    # bf16 weights/activations with f32 accumulation -> loose tolerance vs f32 ref
    assert jnp.allclose(out, ref, atol=2e-2, rtol=2e-2), "mismatch vs JAX reference"

    print("KERNEL_OK")
</pallas_src>

<mosaic_0001>
module attributes {stable_mosaic.version = 11 : i64} {
  func.func @_critic_kernel(%arg0: i32, %arg1: memref<8x32xbf16, #tpu.memory_space<vmem>>, %arg2: memref<8x32xbf16, #tpu.memory_space<vmem>>, %arg3: memref<8x6xbf16, #tpu.memory_space<vmem>>, %arg4: memref<32x256xbf16, #tpu.memory_space<vmem>>, %arg5: memref<32x256xbf16, #tpu.memory_space<vmem>>, %arg6: memref<6x256xbf16, #tpu.memory_space<vmem>>, %arg7: memref<1x256xf32, #tpu.memory_space<vmem>>, %arg8: memref<256x256xbf16, #tpu.memory_space<vmem>>, %arg9: memref<1x256xf32, #tpu.memory_space<vmem>>, %arg10: memref<1x256xf32, #tpu.memory_space<vmem>>, %arg11: memref<1xf32, #tpu.memory_space<smem>>, %arg12: memref<8x1xf32, #tpu.memory_space<vmem>>) attributes {dimension_semantics = [#tpu.dimension_semantics<parallel>], iteration_bounds = array<i64: 1>, scalar_prefetch = 0 : i64, scratch_operands = 0 : i64, tpu.core_type = #tpu.core_type<tc>, window_params = [{transform_indices = @transform_0, window_bounds = array<i64: 8, 32>}, {transform_indices = @transform_1, window_bounds = array<i64: 8, 32>}, {transform_indices = @transform_2, window_bounds = array<i64: 8, 6>}, {pipeline_mode = #tpu.pipeline_mode<synchronous>, transform_indices = @transform_3, window_bounds = array<i64: 32, 256>}, {pipeline_mode = #tpu.pipeline_mode<synchronous>, transform_indices = @transform_4, window_bounds = array<i64: 32, 256>}, {pipeline_mode = #tpu.pipeline_mode<synchronous>, transform_indices = @transform_5, window_bounds = array<i64: 6, 256>}, {pipeline_mode = #tpu.pipeline_mode<synchronous>, transform_indices = @transform_6, window_bounds = array<i64: 1, 256>}, {pipeline_mode = #tpu.pipeline_mode<synchronous>, transform_indices = @transform_7, window_bounds = array<i64: 256, 256>}, {pipeline_mode = #tpu.pipeline_mode<synchronous>, transform_indices = @transform_8, window_bounds = array<i64: 1, 256>}, {pipeline_mode = #tpu.pipeline_mode<synchronous>, transform_indices = @transform_9, window_bounds = array<i64: 1, 256>}, {transform_indices = @transform_10, window_bounds = array<i64: 1>}, {transform_indices = @transform_11, window_bounds = array<i64: 8, 1>}]} {
    %c0 = arith.constant 0 : index
    %c0_0 = arith.constant 0 : index
    %0 = vector.load %arg1[%c0, %c0_0] : memref<8x32xbf16, #tpu.memory_space<vmem>>, vector<8x32xbf16>
    %c0_1 = arith.constant 0 : index
    %c0_2 = arith.constant 0 : index
    %1 = vector.load %arg4[%c0_1, %c0_2] : memref<32x256xbf16, #tpu.memory_space<vmem>>, vector<32x256xbf16>
    %cst = arith.constant dense<0.000000e+00> : vector<8x256xf32>
    %2 = tpu.matmul %0, %1, %cst {dimension_numbers = #tpu.dot_dimension_numbers<[1], [0], [0], [1], [0, 0, 1, 1], [], []>} : vector<8x32xbf16>, vector<32x256xbf16>, vector<8x256xf32> -> vector<8x256xf32>
    %c0_3 = arith.constant 0 : index
    %c0_4 = arith.constant 0 : index
    %3 = vector.load %arg2[%c0_3, %c0_4] : memref<8x32xbf16, #tpu.memory_space<vmem>>, vector<8x32xbf16>
    %c0_5 = arith.constant 0 : index
    %c0_6 = arith.constant 0 : index
    %4 = vector.load %arg5[%c0_5, %c0_6] : memref<32x256xbf16, #tpu.memory_space<vmem>>, vector<32x256xbf16>
    %cst_7 = arith.constant dense<0.000000e+00> : vector<8x256xf32>
    %5 = tpu.matmul %3, %4, %cst_7 {dimension_numbers = #tpu.dot_dimension_numbers<[1], [0], [0], [1], [0, 0, 1, 1], [], []>} : vector<8x32xbf16>, vector<32x256xbf16>, vector<8x256xf32> -> vector<8x256xf32>
    %6 = arith.addf %2, %5 : vector<8x256xf32>
    %c0_8 = arith.constant 0 : index
    %c0_9 = arith.constant 0 : index
    %7 = vector.load %arg3[%c0_8, %c0_9] : memref<8x6xbf16, #tpu.memory_space<vmem>>, vector<8x6xbf16>
    %c0_10 = arith.constant 0 : index
    %c0_11 = arith.constant 0 : index
    %8 = vector.load %arg6[%c0_10, %c0_11] : memref<6x256xbf16, #tpu.memory_space<vmem>>, vector<6x256xbf16>
    %cst_12 = arith.constant dense<0.000000e+00> : vector<8x256xf32>
    %9 = tpu.matmul %7, %8, %cst_12 {dimension_numbers = #tpu.dot_dimension_numbers<[1], [0], [0], [1], [0, 0, 1, 1], [], []>} : vector<8x6xbf16>, vector<6x256xbf16>, vector<8x256xf32> -> vector<8x256xf32>
    %10 = arith.addf %6, %9 : vector<8x256xf32>
    %c0_13 = arith.constant 0 : index
    %c0_14 = arith.constant 0 : index
    %11 = vector.load %arg7[%c0_13, %c0_14] : memref<1x256xf32, #tpu.memory_space<vmem>>, vector<1x256xf32>
    %12 = vector.broadcast %11 : vector<1x256xf32> to vector<8x256xf32>
    %13 = arith.addf %10, %12 : vector<8x256xf32>
    %14 = arith.negf %13 : vector<8x256xf32>
    %15 = math.exp %14 : vector<8x256xf32>
    %cst_15 = arith.constant 1.000000e+00 : f32
    %16 = vector.broadcast %cst_15 : f32 to vector<8x256xf32>
    %17 = arith.addf %16, %15 : vector<8x256xf32>
    %18 = arith.divf %16, %17 : vector<8x256xf32>
    %19 = arith.mulf %13, %18 : vector<8x256xf32>
    %20 = arith.truncf %19 : vector<8x256xf32> to vector<8x256xbf16>
    %c0_16 = arith.constant 0 : index
    %c0_17 = arith.constant 0 : index
    %21 = vector.load %arg8[%c0_16, %c0_17] : memref<256x256xbf16, #tpu.memory_space<vmem>>, vector<256x256xbf16>
    %cst_18 = arith.constant dense<0.000000e+00> : vector<8x256xf32>
    %22 = tpu.matmul %20, %21, %cst_18 {dimension_numbers = #tpu.dot_dimension_numbers<[1], [0], [0], [1], [0, 0, 1, 1], [], []>} : vector<8x256xbf16>, vector<256x256xbf16>, vector<8x256xf32> -> vector<8x256xf32>
    %c0_19 = arith.constant 0 : index
    %c0_20 = arith.constant 0 : index
    %23 = vector.load %arg9[%c0_19, %c0_20] : memref<1x256xf32, #tpu.memory_space<vmem>>, vector<1x256xf32>
    %24 = vector.broadcast %23 : vector<1x256xf32> to vector<8x256xf32>
    %25 = arith.addf %22, %24 : vector<8x256xf32>
    %26 = arith.negf %25 : vector<8x256xf32>
    %27 = math.exp %26 : vector<8x256xf32>
    %cst_21 = arith.constant 1.000000e+00 : f32
    %28 = vector.broadcast %cst_21 : f32 to vector<8x256xf32>
    %29 = arith.addf %28, %27 : vector<8x256xf32>
    %30 = arith.divf %28, %29 : vector<8x256xf32>
    %31 = arith.mulf %25, %30 : vector<8x256xf32>
    %c0_22 = arith.constant 0 : index
    %c0_23 = arith.constant 0 : index
    %32 = vector.load %arg10[%c0_22, %c0_23] : memref<1x256xf32, #tpu.memory_space<vmem>>, vector<1x256xf32>
    %33 = vector.broadcast %32 : vector<1x256xf32> to vector<8x256xf32>
    %34 = arith.mulf %31, %33 : vector<8x256xf32>
    %cst_24 = arith.constant dense<0.000000e+00> : vector<8xf32>
    %35 = vector.multi_reduction <add>, %34, %cst_24 [1] : vector<8x256xf32> to vector<8xf32>
    %36 = vector.shape_cast %35 : vector<8xf32> to vector<8x1xf32>
    %c0_25 = arith.constant 0 : index
    %37 = memref.load %arg11[%c0_25] : memref<1xf32, #tpu.memory_space<smem>>
    %38 = vector.broadcast %37 : f32 to vector<8x1xf32>
    %39 = arith.addf %36, %38 : vector<8x1xf32>
    %c0_26 = arith.constant 0 : index
    %c0_27 = arith.constant 0 : index
    %40 = vector.load %arg12[%c0_26, %c0_27] : memref<8x1xf32, #tpu.memory_space<vmem>>, vector<8x1xf32>
    tpu.vector_store %arg12[%c0_26, %c0_27], %39 {strides = array<i32>} : memref<8x1xf32, #tpu.memory_space<vmem>>, vector<8x1xf32>,
    return
  }
  func.func @transform_0(%arg0: i32) -> (i32, i32) {
    %c0_i32 = arith.constant 0 : i32
    %c0_i32_0 = arith.constant 0 : i32
    return %arg0, %c0_i32 : i32, i32
  }
  func.func @transform_1(%arg0: i32) -> (i32, i32) {
    %c0_i32 = arith.constant 0 : i32
    %c0_i32_0 = arith.constant 0 : i32
    return %arg0, %c0_i32 : i32, i32
  }
  func.func @transform_2(%arg0: i32) -> (i32, i32) {
    %c0_i32 = arith.constant 0 : i32
    %c0_i32_0 = arith.constant 0 : i32
    return %arg0, %c0_i32 : i32, i32
  }
  func.func @transform_3(%arg0: i32) -> (i32, i32) {
    %c0_i32 = arith.constant 0 : i32
    %c0_i32_0 = arith.constant 0 : i32
    %c0_i32_1 = arith.constant 0 : i32
    return %c0_i32, %c0_i32_0 : i32, i32
  }
  func.func @transform_4(%arg0: i32) -> (i32, i32) {
    %c0_i32 = arith.constant 0 : i32
    %c0_i32_0 = arith.constant 0 : i32
    %c0_i32_1 = arith.constant 0 : i32
    return %c0_i32, %c0_i32_0 : i32, i32
  }
  func.func @transform_5(%arg0: i32) -> (i32, i32) {
    %c0_i32 = arith.constant 0 : i32
    %c0_i32_0 = arith.constant 0 : i32
    %c0_i32_1 = arith.constant 0 : i32
    return %c0_i32, %c0_i32_0 : i32, i32
  }
  func.func @transform_6(%arg0: i32) -> (i32, i32) {
    %c0_i32 = arith.constant 0 : i32
    %c0_i32_0 = arith.constant 0 : i32
    %c0_i32_1 = arith.constant 0 : i32
    return %c0_i32, %c0_i32_0 : i32, i32
  }
  func.func @transform_7(%arg0: i32) -> (i32, i32) {
    %c0_i32 = arith.constant 0 : i32
    %c0_i32_0 = arith.constant 0 : i32
    %c0_i32_1 = arith.constant 0 : i32
    return %c0_i32, %c0_i32_0 : i32, i32
  }
  func.func @transform_8(%arg0: i32) -> (i32, i32) {
    %c0_i32 = arith.constant 0 : i32
    %c0_i32_0 = arith.constant 0 : i32
    %c0_i32_1 = arith.constant 0 : i32
    return %c0_i32, %c0_i32_0 : i32, i32
  }
  func.func @transform_9(%arg0: i32) -> (i32, i32) {
    %c0_i32 = arith.constant 0 : i32
    %c0_i32_0 = arith.constant 0 : i32
    %c0_i32_1 = arith.constant 0 : i32
    return %c0_i32, %c0_i32_0 : i32, i32
  }
  func.func @transform_10(%arg0: i32) -> i32 {
    %c0_i32 = arith.constant 0 : i32
    %c0_i32_0 = arith.constant 0 : i32
    return %c0_i32 : i32
  }
  func.func @transform_11(%arg0: i32) -> (i32, i32) {
    %c0_i32 = arith.constant 0 : i32
    %c0_i32_0 = arith.constant 0 : i32
    return %arg0, %c0_i32 : i32, i32
  }
}

</mosaic_0001>

<llo_original>
// kernel: critic_forward.1
$region0: #{critic_forward.1}
  #allocation0 [shape = 'u32[]', space=smem, size = 0x4, offset = 0x4, fixed_abs, tag = 'smem constant byte address 0x4 - core index']
  #allocation1 [shape = 'u32[72,128]{1,0:T(1,128)}', space=vmem, size = 0x9000, scoped, tag = 'internal scratch']
  #allocation2 [shape = 'f32[1]{0:T(128)S(6)}', space=smem, size = 0x200, scoped, tag = 'scoped memory for critic_forward.1']
  %s0 = inlined_call_operand.vmem [shape: bf16[8,32], index: 0, kind: input, shape index: {}]
  %s1 = inlined_call_operand.vmem [shape: bf16[8,32], index: 1, kind: input, shape index: {}]
  %s2 = inlined_call_operand.vmem [shape: bf16[8,6], index: 2, kind: input, shape index: {}]
  %s3 = inlined_call_operand.vmem [shape: bf16[32,256], index: 3, kind: input, shape index: {}]
  %s4 = inlined_call_operand.hbm [shape: bf16[32,256], index: 4, kind: input, shape index: {}]
  %s5 = inlined_call_operand.vmem [shape: bf16[6,256], index: 5, kind: input, shape index: {}]
  %s6 = inlined_call_operand.vmem [shape: f32[1,256], index: 6, kind: input, shape index: {}]
  %s7 = inlined_call_operand.hbm [shape: bf16[256,256], index: 7, kind: input, shape index: {}]
  %s8 = inlined_call_operand.vmem [shape: f32[1,256], index: 8, kind: input, shape index: {}]
  %s9 = inlined_call_operand.vmem [shape: f32[1,256], index: 9, kind: input, shape index: {}]
  %s10 = inlined_call_operand.<no memory space> [shape: f32[1], index: 10, kind: input, shape index: {}]
  %s11 = inlined_call_operand.vmem [shape: f32[8,1], index: 11, kind: output, shape index: {}]
  %s12 = sld [smem:[#allocation0]]
  $region62: #{critic_forward.1} parent=0
    _
  %s14 = ssub.s32 1, %s12
  %s15 = scalar_select 0, %s14, %s12
  %16 = sst [smem:[#allocation2]] %s10
  $region1: #{critic_forward.1} parent=0
    #allocation3 [shape = 'u8[16384]{0}', space=vmem, size = 0x4000, scoped, tag = 'input window, operand 4, single buffered']
    #allocation4 [shape = 's32[1]{0}', space=sflag, size = 0x4, scoped, tag = 'scoped memory for critic_forward.1']
    #allocation5 [shape = 'u8[131072]{0}', space=vmem, size = 0x20000, scoped, tag = 'input window, operand 7, single buffered']
    #allocation6 [shape = 's32[1]{0}', space=sflag, size = 0x4, scoped, tag = 'scoped memory for critic_forward.1']
    %17 = vsyncpa [#allocation4], 0
    %18 = vsyncpa [#allocation6], 0
    // Predicated region
    $region2: #{critic_forward.1} parent=1 // pred_check
      _
    $region3: #{critic_forward.1} parent=1 // pred_check_branch
      %20 = sbr.rel (0) target = $region5
    $region4: #{critic_forward.1} parent=1 // pred_region
      _
    $region5: #{critic_forward.1} parent=1 // pred_fallthru
      _
    // Predicated region
    $region6: #{critic_forward.1} parent=1 // pred_check
      _
    $region7: #{critic_forward.1} parent=1 // pred_check_branch
      %22 = sbr.rel (0) target = $region9
    $region8: #{critic_forward.1} parent=1 // pred_region
      _
    $region9: #{critic_forward.1} parent=1 // pred_fallthru
      _
    // Predicated region
    $region10: #{critic_forward.1} parent=1 // pred_check
      _
    $region11: #{critic_forward.1} parent=1 // pred_check_branch
      %24 = sbr.rel (0) target = $region13
    $region12: #{critic_forward.1} parent=1 // pred_region
      _
    $region13: #{critic_forward.1} parent=1 // pred_fallthru
      _
    // Predicated region
    $region14: #{critic_forward.1} parent=1 // pred_check
      _
    $region15: #{critic_forward.1} parent=1 // pred_check_branch
      %26 = sbr.rel (0) target = $region17
    $region16: #{critic_forward.1} parent=1 // pred_region
      _
    $region17: #{critic_forward.1} parent=1 // pred_fallthru
      _
    // Predicated region
    $region18: #{critic_forward.1} parent=1 // pred_check
      _
    $region19: #{critic_forward.1} parent=1 // pred_check_branch
      %28 = sbr.rel (0) target = $region21
    $region20: #{critic_forward.1} parent=1 // pred_region
      %30 = vsyncadd [#allocation4], 0
      %s31 = sshll.u32 %s4, 4
      %s32 = int_to_ptr.hbm [resolvable:$true] %s31
      %s33 = sshll.u32 [#allocation3], 4
      %s34 = int_to_ptr.vmem [resolvable:$true] %s33
      %39 = dma.hbm_to_vmem [thread:$0]  %s32, 512, %s34, [#allocation4], 128, 128, 8
    $region21: #{critic_forward.1} parent=1 // pred_fallthru
      _
    // Predicated region
    $region22: #{critic_forward.1} parent=1 // pred_check
      _
    $region23: #{critic_forward.1} parent=1 // pred_check_branch
      %41 = sbr.rel (0) target = $region25
    $region24: #{critic_forward.1} parent=1 // pred_region
      _
    $region25: #{critic_forward.1} parent=1 // pred_fallthru
      _
    // Predicated region
    $region26: #{critic_forward.1} parent=1 // pred_check
      _
    $region27: #{critic_forward.1} parent=1 // pred_check_branch
      %43 = sbr.rel (0) target = $region29
    $region28: #{critic_forward.1} parent=1 // pred_region
      _
    $region29: #{critic_forward.1} parent=1 // pred_fallthru
      _
    // Predicated region
    $region30: #{critic_forward.1} parent=1 // pred_check
      _
    $region31: #{critic_forward.1} parent=1 // pred_check_branch
      %45 = sbr.rel (0) target = $region33
    $region32: #{critic_forward.1} parent=1 // pred_region
      %47 = vsyncadd [#allocation6], 0
      %s48 = sshll.u32 %s7, 4
      %s49 = int_to_ptr.hbm [resolvable:$true] %s48
      %s50 = sshll.u32 [#allocation5], 4
      %s51 = int_to_ptr.vmem [resolvable:$true] %s50
      %56 = dma.hbm_to_vmem [thread:$0]  %s49, 4096, %s51, [#allocation6], 128, 128, 8
    $region33: #{critic_forward.1} parent=1 // pred_fallthru
      _
    // Predicated region
    $region34: #{critic_forward.1} parent=1 // pred_check
      _
    $region35: #{critic_forward.1} parent=1 // pred_check_branch
      %58 = sbr.rel (0) target = $region37
    $region36: #{critic_forward.1} parent=1 // pred_region
      _
    $region37: #{critic_forward.1} parent=1 // pred_fallthru
      _
    // Predicated region
    $region38: #{critic_forward.1} parent=1 // pred_check
      _
    $region39: #{critic_forward.1} parent=1 // pred_check_branch
      %60 = sbr.rel (0) target = $region41
    $region40: #{critic_forward.1} parent=1 // pred_region
      _
    $region41: #{critic_forward.1} parent=1 // pred_fallthru
      _
    // Predicated region
    $region42: #{critic_forward.1} parent=1 // pred_check
      _
    $region43: #{critic_forward.1} parent=1 // pred_check_branch
      %62 = sbr.rel (0) target = $region45
    $region44: #{critic_forward.1} parent=1 // pred_region
      _
    $region45: #{critic_forward.1} parent=1 // pred_fallthru
      _
    // Predicated region
    $region46: #{critic_forward.1} parent=1 // pred_check
      _
    $region47: #{critic_forward.1} parent=1 // pred_check_branch
      %64 = sbr.rel (0) target = $region49
    $region48: #{critic_forward.1} parent=1 // pred_region
      %66 = dma.done [#allocation4], 512
    $region49: #{critic_forward.1} parent=1 // pred_fallthru
      _
    // Predicated region
    $region50: #{critic_forward.1} parent=1 // pred_check
      _
    $region51: #{critic_forward.1} parent=1 // pred_check_branch
      %68 = sbr.rel (0) target = $region53
    $region52: #{critic_forward.1} parent=1 // pred_region
      %70 = dma.done [#allocation6], 4096
    $region53: #{critic_forward.1} parent=1 // pred_fallthru
      _
    %v72 = vld [vmem:[%s0] sm:$0xf]
    %v73 = vld [vmem:[%s3] sm:$0xff]
    %v74 = vld [vmem:[%s3 + $0x8] sm:$0xff]
    %v75 = vld [vmem:[%s3 + $0x10] sm:$0xff]
    %v76 = vld [vmem:[%s3 + $0x18] sm:$0xff]
    %v77 = vld [vmem:[%s1] sm:$0xf]
    %v78 = vld [vmem:[#allocation3] sm:$0xff]
    %v79 = vld [vmem:[#allocation3 + $0x8] sm:$0xff]
    %v80 = vld [vmem:[#allocation3 + $0x10] sm:$0xff]
    %v81 = vld [vmem:[#allocation3 + $0x18] sm:$0xff]
    %v86 = vunpack.c.l.b16 %v78
    %v87 = vunpack.c.h.b16 %v78
    %v88 = vunpack.c.l.b16 %v79
    %v89 = vunpack.c.h.b16 %v79
    %v90 = vunpack.c.l.b16 %v80
    %v91 = vunpack.c.h.b16 %v80
    %v92 = vunpack.c.l.b16 %v81
    %v93 = vunpack.c.h.b16 %v81
    %v94 = vpack.c.b16 %v88, %v86
    %v95 = vpack.c.b16 %v89, %v87
    %v96 = vpack.c.b16 %v92, %v90
    %v97 = vpack.c.b16 %v93, %v91
    %vm102 = vcmask 261120
    %v104 = vsel %vm102, %v77, 0
    %106 = vmatpush.bf16.msra.mxu0 0
    %107 = vmatpush.bf16.msra.mxu0 0
    %108 = vmatpush.bf16.msra.mxu0 0
    %109 = vmatpush.bf16.msra.mxu0 0
    %110 = vmatpush.bf16.msra.mxu0 0
    %111 = vmatpush.bf16.msra.mxu0 0
    %112 = vmatpush.bf16.msra.mxu0 %v96
    %113 = vmatpush.bf16.msra.mxu0 %v94
    %114 = vmatmul.bf16.gmra.mxu0 %v104
    %v115 = vpop.f32.mrf.mxu0
    %v116 = vadd.f32 0.0, %v115
    %v117 = vpop.f32.mrf.mxu0
    %118 = vdwg.mxu0
    %119 = vmatpush.bf16.msra.mxu0 0
    %120 = vmatpush.bf16.msra.mxu0 0
    %121 = vmatpush.bf16.msra.mxu0 0
    %122 = vmatpush.bf16.msra.mxu0 0
    %123 = vmatpush.bf16.msra.mxu0 0
    %124 = vmatpush.bf16.msra.mxu0 0
    %125 = vmatpush.bf16.msra.mxu0 %v97
    %126 = vmatpush.bf16.msra.mxu0 %v95
    %127 = vmatmul.bf16.gmra.mxu0 %v104
    %v128 = vpop.f32.mrf.mxu0
    %v129 = vadd.f32 0.0, %v128
    %v130 = vpop.f32.mrf.mxu0
    %131 = vdwg.mxu0
    %v136 = vunpack.c.l.b16 %v73
    %v137 = vunpack.c.h.b16 %v73
    %v138 = vunpack.c.l.b16 %v74
    %v139 = vunpack.c.h.b16 %v74
    %v140 = vunpack.c.l.b16 %v75
    %v141 = vunpack.c.h.b16 %v75
    %v142 = vunpack.c.l.b16 %v76
    %v143 = vunpack.c.h.b16 %v76
    %v144 = vpack.c.b16 %v138, %v136
    %v145 = vpack.c.b16 %v139, %v137
    %v146 = vpack.c.b16 %v142, %v140
    %v147 = vpack.c.b16 %v143, %v141
    %v153 = vsel %vm102, %v72, 0
    %155 = vmatpush.bf16.msra.mxu0 0
    %156 = vmatpush.bf16.msra.mxu0 0
    %157 = vmatpush.bf16.msra.mxu0 0
    %158 = vmatpush.bf16.msra.mxu0 0
    %159 = vmatpush.bf16.msra.mxu0 0
    %160 = vmatpush.bf16.msra.mxu0 0
    %161 = vmatpush.bf16.msra.mxu0 %v146
    %162 = vmatpush.bf16.msra.mxu0 %v144
    %163 = vmatmul.bf16.gmra.mxu0 %v153
    %v164 = vpop.f32.mrf.mxu0
    %v165 = vadd.f32 %v116, %v164
    %v166 = vpop.f32.mrf.mxu0
    %167 = vdwg.mxu0
    %168 = vmatpush.bf16.msra.mxu0 0
    %169 = vmatpush.bf16.msra.mxu0 0
    %170 = vmatpush.bf16.msra.mxu0 0
    %171 = vmatpush.bf16.msra.mxu0 0
    %172 = vmatpush.bf16.msra.mxu0 0
    %173 = vmatpush.bf16.msra.mxu0 0
    %174 = vmatpush.bf16.msra.mxu0 %v147
    %175 = vmatpush.bf16.msra.mxu0 %v145
    %176 = vmatmul.bf16.gmra.mxu0 %v153
    %v177 = vpop.f32.mrf.mxu0
    %v178 = vadd.f32 %v129, %v177
    %v179 = vpop.f32.mrf.mxu0
    %180 = vdwg.mxu0
    %v181 = vld [vmem:[%s2] sm:$0xf]
    %v182 = vld [vmem:[%s5] sm:$0x77]
    %v184 = vunpack.c.l.b16 %v182
    %v185 = vunpack.c.h.b16 %v182
    %v186 = vpack.c.b16 %v184, %v184
    %v187 = vpack.c.b16 %v185, %v185
    %vm188 = vcmask 48128
    %v190 = vsel %vm188, %v181, 0
    %vm192 = vcmask 1042432
    %v194 = vsel %vm192, %v186, 0
    %v197 = vsel %vm192, %v187, 0
    %199 = vmatpush.bf16.msra.mxu0 0
    %200 = vmatpush.bf16.msra.mxu0 0
    %201 = vmatpush.bf16.msra.mxu0 0
    %202 = vmatpush.bf16.msra.mxu0 0
    %203 = vmatpush.bf16.msra.mxu0 0
    %204 = vmatpush.bf16.msra.mxu0 0
    %205 = vmatpush.bf16.msra.mxu0 0
    %206 = vmatpush.bf16.msra.mxu0 %v194
    %207 = vmatmul.bf16.gmra.mxu0 %v190
    %v208 = vpop.f32.mrf.mxu0
    %v209 = vadd.f32 0.0, %v208
    %v210 = vpop.f32.mrf.mxu0
    %211 = vdwg.mxu0
    %212 = vmatpush.bf16.msra.mxu0 0
    %213 = vmatpush.bf16.msra.mxu0 0
    %214 = vmatpush.bf16.msra.mxu0 0
    %215 = vmatpush.bf16.msra.mxu0 0
    %216 = vmatpush.bf16.msra.mxu0 0
    %217 = vmatpush.bf16.msra.mxu0 0
    %218 = vmatpush.bf16.msra.mxu0 0
    %219 = vmatpush.bf16.msra.mxu0 %v197
    %220 = vmatmul.bf16.gmra.mxu0 %v190
    %v221 = vpop.f32.mrf.mxu0
    %v222 = vadd.f32 0.0, %v221
    %v223 = vpop.f32.mrf.mxu0
    %224 = vdwg.mxu0
    %v225 = vadd.f32 %v165, %v209
    %v226 = vadd.f32 %v178, %v222
    %v227 = vld [vmem:[%s6] sm:$0x3]
    %v229 = vperm.slane %v227, 0
    %v230 = vperm.slane %v227, 1
    %v233 = vadd.f32 %v225, %v229
    %v234 = vadd.f32 %v226, %v230
    %v235 = vxor.u32 %v233, 2147483648
    %v236 = vxor.u32 %v234, 2147483648
    %v237 = vmul.f32 %v235, 1.442695
    %v238 = vpow.pop %v237
    %v239 = vmul.f32 %v236, 1.442695
    %v240 = vpow.pop %v239
    %v241 = vadd.f32 %v238, 1.0
    %v242 = vadd.f32 %v240, 1.0
    %v243 = vrcp.pop %v241
    %v244 = vmul.f32 %v241, %v243
    %v245 = vsub.f32 1.0, %v244
    %v246 = vmul.f32 %v243, %v245
    %v247 = vadd.f32 %v243, %v246
    %vm248 = vweird.f32 %v241
    %vm249 = vweird.f32 %v243
    %vm250 = vmor %vm248, %vm249
    %v251 = vsel %vm250, %v243, %v247
    %v252 = vand.u32 2147483647, %v241
    %vm253 = vcmp.eq.f32.partialorder %v252, 8.507059e+37
    %v254 = vand.u32 %v241, 2147483648
    %v255 = vor.u32 1.1754944e-38, %v254
    %v256 = vsel %vm253, %v255, %v251
    %v257 = vmul.f32 1.0, %v256
    %v258 = vrcp.pop %v242
    %v259 = vmul.f32 %v242, %v258
    %v260 = vsub.f32 1.0, %v259
    %v261 = vmul.f32 %v258, %v260
    %v262 = vadd.f32 %v258, %v261
    %vm263 = vweird.f32 %v242
    %vm264 = vweird.f32 %v258
    %vm265 = vmor %vm263, %vm264
    %v266 = vsel %vm265, %v258, %v262
    %v267 = vand.u32 2147483647, %v242
    %vm268 = vcmp.eq.f32.partialorder %v267, 8.507059e+37
    %v269 = vand.u32 %v242, 2147483648
    %v270 = vor.u32 1.1754944e-38, %v269
    %v271 = vsel %vm268, %v270, %v266
    %v272 = vmul.f32 1.0, %v271
    %v273 = vmul.f32 %v233, %v257
    %v274 = vmul.f32 %v234, %v272
    %v275 = vpack.c.bf16 %v273, %v273
    %v276 = vpack.c.bf16 %v274, %v274
    %v277 = vld [vmem:[#allocation5] sm:$0xff]
    %v278 = vld [vmem:[#allocation5 + $0x8] sm:$0xff]
    %v279 = vld [vmem:[#allocation5 + $0x10] sm:$0xff]
    %v280 = vld [vmem:[#allocation5 + $0x18] sm:$0xff]
    %v281 = vld [vmem:[#allocation5 + $0x20] sm:$0xff]
    %v282 = vld [vmem:[#allocation5 + $0x28] sm:$0xff]
    %v283 = vld [vmem:[#allocation5 + $0x30] sm:$0xff]
    %v284 = vld [vmem:[#allocation5 + $0x38] sm:$0xff]
    %v285 = vld [vmem:[#allocation5 + $0x40] sm:$0xff]
    %v286 = vld [vmem:[#allocation5 + $0x48] sm:$0xff]
    %v287 = vld [vmem:[#allocation5 + $0x50] sm:$0xff]
    %v288 = vld [vmem:[#allocation5 + $0x58] sm:$0xff]
    %v289 = vld [vmem:[#allocation5 + $0x60] sm:$0xff]
    %v290 = vld [vmem:[#allocation5 + $0x68] sm:$0xff]
    %v291 = vld [vmem:[#allocation5 + $0x70] sm:$0xff]
    %v292 = vld [vmem:[#allocation5 + $0x78] sm:$0xff]
    %v293 = vld [vmem:[#allocation5 + $0x80] sm:$0xff]
    %v294 = vld [vmem:[#allocation5 + $0x88] sm:$0xff]
    %v295 = vld [vmem:[#allocation5 + $0x90] sm:$0xff]
    %v296 = vld [vmem:[#allocation5 + $0x98] sm:$0xff]
    %v297 = vld [vmem:[#allocation5 + $0xa0] sm:$0xff]
    %v298 = vld [vmem:[#allocation5 + $0xa8] sm:$0xff]
    %v299 = vld [vmem:[#allocation5 + $0xb0] sm:$0xff]
    %v300 = vld [vmem:[#allocation5 + $0xb8] sm:$0xff]
    %v301 = vld [vmem:[#allocation5 + $0xc0] sm:$0xff]
    %v302 = vld [vmem:[#allocation5 + $0xc8] sm:$0xff]
    %v303 = vld [vmem:[#allocation5 + $0xd0] sm:$0xff]
    %v304 = vld [vmem:[#allocation5 + $0xd8] sm:$0xff]
    %v305 = vld [vmem:[#allocation5 + $0xe0] sm:$0xff]
    %v306 = vld [vmem:[#allocation5 + $0xe8] sm:$0xff]
    %v307 = vld [vmem:[#allocation5 + $0xf0] sm:$0xff]
    %v308 = vld [vmem:[#allocation5 + $0xf8] sm:$0xff]
    %v309 = vld [vmem:[%s8] sm:$0x3]
    %v311 = vperm.slane %v309, 0
    %v312 = vperm.slane %v309, 1
    %v347 = vunpack.c.l.b16 %v277
    %v348 = vunpack.c.h.b16 %v277
    %v349 = vunpack.c.l.b16 %v278
    %v350 = vunpack.c.h.b16 %v278
    %v351 = vunpack.c.l.b16 %v279
    %v352 = vunpack.c.h.b16 %v279
    %v353 = vunpack.c.l.b16 %v280
    %v354 = vunpack.c.h.b16 %v280
    %v355 = vunpack.c.l.b16 %v281
    %v356 = vunpack.c.h.b16 %v281
    %v357 = vunpack.c.l.b16 %v282
    %v358 = vunpack.c.h.b16 %v282
    %v359 = vunpack.c.l.b16 %v283
    %v360 = vunpack.c.h.b16 %v283
    %v361 = vunpack.c.l.b16 %v284
    %v362 = vunpack.c.h.b16 %v284
    %v363 = vunpack.c.l.b16 %v285
    %v364 = vunpack.c.h.b16 %v285
    %v365 = vunpack.c.l.b16 %v286
    %v366 = vunpack.c.h.b16 %v286
    %v367 = vunpack.c.l.b16 %v287
    %v368 = vunpack.c.h.b16 %v287
    %v369 = vunpack.c.l.b16 %v288
    %v370 = vunpack.c.h.b16 %v288
    %v371 = vunpack.c.l.b16 %v289
    %v372 = vunpack.c.h.b16 %v289
    %v373 = vunpack.c.l.b16 %v290
    %v374 = vunpack.c.h.b16 %v290
    %v375 = vunpack.c.l.b16 %v291
    %v376 = vunpack.c.h.b16 %v291
    %v377 = vunpack.c.l.b16 %v292
    %v378 = vunpack.c.h.b16 %v292
    %v379 = vunpack.c.l.b16 %v293
    %v380 = vunpack.c.h.b16 %v293
    %v381 = vunpack.c.l.b16 %v294
    %v382 = vunpack.c.h.b16 %v294
    %v383 = vunpack.c.l.b16 %v295
    %v384 = vunpack.c.h.b16 %v295
    %v385 = vunpack.c.l.b16 %v296
    %v386 = vunpack.c.h.b16 %v296
    %v387 = vunpack.c.l.b16 %v297
    %v388 = vunpack.c.h.b16 %v297
    %v389 = vunpack.c.l.b16 %v298
    %v390 = vunpack.c.h.b16 %v298
    %v391 = vunpack.c.l.b16 %v299
    %v392 = vunpack.c.h.b16 %v299
    %v393 = vunpack.c.l.b16 %v300
    %v394 = vunpack.c.h.b16 %v300
    %v395 = vunpack.c.l.b16 %v301
    %v396 = vunpack.c.h.b16 %v301
    %v397 = vunpack.c.l.b16 %v302
    %v398 = vunpack.c.h.b16 %v302
    %v399 = vunpack.c.l.b16 %v303
    %v400 = vunpack.c.h.b16 %v303
    %v401 = vunpack.c.l.b16 %v304
    %v402 = vunpack.c.h.b16 %v304
    %v403 = vunpack.c.l.b16 %v305
    %v404 = vunpack.c.h.b16 %v305
    %v405 = vunpack.c.l.b16 %v306
    %v406 = vunpack.c.h.b16 %v306
    %v407 = vunpack.c.l.b16 %v307
    %v408 = vunpack.c.h.b16 %v307
    %v409 = vunpack.c.l.b16 %v308
    %v410 = vunpack.c.h.b16 %v308
    %v411 = vpack.c.b16 %v349, %v347
    %v412 = vpack.c.b16 %v350, %v348
    %v413 = vpack.c.b16 %v353, %v351
    %v414 = vpack.c.b16 %v354, %v352
    %v415 = vpack.c.b16 %v357, %v355
    %v416 = vpack.c.b16 %v358, %v356
    %v417 = vpack.c.b16 %v361, %v359
    %v418 = vpack.c.b16 %v362, %v360
    %v419 = vpack.c.b16 %v365, %v363
    %v420 = vpack.c.b16 %v366, %v364
    %v421 = vpack.c.b16 %v369, %v367
    %v422 = vpack.c.b16 %v370, %v368
    %v423 = vpack.c.b16 %v373, %v371
    %v424 = vpack.c.b16 %v374, %v372
    %v425 = vpack.c.b16 %v377, %v375
    %v426 = vpack.c.b16 %v378, %v376
    %v427 = vpack.c.b16 %v381, %v379
    %v428 = vpack.c.b16 %v382, %v380
    %v429 = vpack.c.b16 %v385, %v383
    %v430 = vpack.c.b16 %v386, %v384
    %v431 = vpack.c.b16 %v389, %v387
    %v432 = vpack.c.b16 %v390, %v388
    %v433 = vpack.c.b16 %v393, %v391
    %v434 = vpack.c.b16 %v394, %v392
    %v435 = vpack.c.b16 %v397, %v395
    %v436 = vpack.c.b16 %v398, %v396
    %v437 = vpack.c.b16 %v401, %v399
    %v438 = vpack.c.b16 %v402, %v400
    %v439 = vpack.c.b16 %v405, %v403
    %v440 = vpack.c.b16 %v406, %v404
    %v441 = vpack.c.b16 %v409, %v407
    %v442 = vpack.c.b16 %v410, %v408
    %475 = vmatpush.bf16.msra.mxu0 %v425
    %476 = vmatpush.bf16.msra.mxu0 %v423
    %477 = vmatpush.bf16.msra.mxu0 %v421
    %478 = vmatpush.bf16.msra.mxu0 %v419
    %479 = vmatpush.bf16.msra.mxu0 %v417
    %480 = vmatpush.bf16.msra.mxu0 %v415
    %481 = vmatpush.bf16.msra.mxu0 %v413
    %482 = vmatpush.bf16.msra.mxu0 %v411
    %483 = vmatmul.bf16.gmra.mxu0 %v275
    %v484 = vpop.f32.mrf.mxu0
    %v485 = vadd.f32 %v311, %v484
    %v486 = vpop.f32.mrf.mxu0
    %487 = vdwg.mxu0
    %488 = vmatpush.bf16.msra.mxu0 %v441
    %489 = vmatpush.bf16.msra.mxu0 %v439
    %490 = vmatpush.bf16.msra.mxu0 %v437
    %491 = vmatpush.bf16.msra.mxu0 %v435
    %492 = vmatpush.bf16.msra.mxu0 %v433
    %493 = vmatpush.bf16.msra.mxu0 %v431
    %494 = vmatpush.bf16.msra.mxu0 %v429
    %495 = vmatpush.bf16.msra.mxu0 %v427
    %496 = vmatmul.bf16.gmra.mxu0 %v276
    %v497 = vpop.f32.mrf.mxu0
    %v498 = vadd.f32 %v485, %v497
    %v499 = vpop.f32.mrf.mxu0
    %500 = vdwg.mxu0
    %501 = vmatpush.bf16.msra.mxu0 %v426
    %502 = vmatpush.bf16.msra.mxu0 %v424
    %503 = vmatpush.bf16.msra.mxu0 %v422
    %504 = vmatpush.bf16.msra.mxu0 %v420
    %505 = vmatpush.bf16.msra.mxu0 %v418
    %506 = vmatpush.bf16.msra.mxu0 %v416
    %507 = vmatpush.bf16.msra.mxu0 %v414
    %508 = vmatpush.bf16.msra.mxu0 %v412
    %509 = vmatmul.bf16.gmra.mxu0 %v275
    %v510 = vpop.f32.mrf.mxu0
    %v511 = vadd.f32 %v312, %v510
    %v512 = vpop.f32.mrf.mxu0
    %513 = vdwg.mxu0
    %514 = vmatpush.bf16.msra.mxu0 %v442
    %515 = vmatpush.bf16.msra.mxu0 %v440
    %516 = vmatpush.bf16.msra.mxu0 %v438
    %517 = vmatpush.bf16.msra.mxu0 %v436
    %518 = vmatpush.bf16.msra.mxu0 %v434
    %519 = vmatpush.bf16.msra.mxu0 %v432
    %520 = vmatpush.bf16.msra.mxu0 %v430
    %521 = vmatpush.bf16.msra.mxu0 %v428
    %522 = vmatmul.bf16.gmra.mxu0 %v276
    %v523 = vpop.f32.mrf.mxu0
    %v524 = vadd.f32 %v511, %v523
    %v525 = vpop.f32.mrf.mxu0
    %526 = vdwg.mxu0
    %v527 = vxor.u32 %v498, 2147483648
    %v528 = vxor.u32 %v524, 2147483648
    %v529 = vmul.f32 %v527, 1.442695
    %v530 = vpow.pop %v529
    %v531 = vmul.f32 %v528, 1.442695
    %v532 = vpow.pop %v531
    %v533 = vadd.f32 %v530, 1.0
    %v534 = vadd.f32 %v532, 1.0
    %v535 = vrcp.pop %v533
    %v536 = vmul.f32 %v533, %v535
    %v537 = vsub.f32 1.0, %v536
    %v538 = vmul.f32 %v535, %v537
    %v539 = vadd.f32 %v535, %v538
    %vm540 = vweird.f32 %v533
    %vm541 = vweird.f32 %v535
    %vm542 = vmor %vm540, %vm541
    %v543 = vsel %vm542, %v535, %v539
    %v544 = vand.u32 2147483647, %v533
    %vm545 = vcmp.eq.f32.partialorder %v544, 8.507059e+37
    %v546 = vand.u32 %v533, 2147483648
    %v547 = vor.u32 1.1754944e-38, %v546
    %v548 = vsel %vm545, %v547, %v543
    %v549 = vmul.f32 1.0, %v548
    %v550 = vrcp.pop %v534
    %v551 = vmul.f32 %v534, %v550
    %v552 = vsub.f32 1.0, %v551
    %v553 = vmul.f32 %v550, %v552
    %v554 = vadd.f32 %v550, %v553
    %vm555 = vweird.f32 %v534
    %vm556 = vweird.f32 %v550
    %vm557 = vmor %vm555, %vm556
    %v558 = vsel %vm557, %v550, %v554
    %v559 = vand.u32 2147483647, %v534
    %vm560 = vcmp.eq.f32.partialorder %v559, 8.507059e+37
    %v561 = vand.u32 %v534, 2147483648
    %v562 = vor.u32 1.1754944e-38, %v561
    %v563 = vsel %vm560, %v562, %v558
    %v564 = vmul.f32 1.0, %v563
    %v565 = vmul.f32 %v498, %v549
    %v566 = vmul.f32 %v524, %v564
    %v567 = vld [vmem:[%s9] sm:$0x3]
    %v569 = vperm.slane %v567, 0
    %v570 = vperm.slane %v567, 1
    %v573 = vmul.f32 %v565, %v569
    %v574 = vmul.f32 %v566, %v570
    %v575 = vadd.f32 %v573, %v574
    %576 = vadd.xlane.f32.xlu0 %v575
    %v577 = vpop.xlane.xlu0 %576
    %s578 = sld [smem:[#allocation2]]
    %v579 = vstv %s578
    %v580 = vadd.f32 %v577, %v579
    %vm581 = vcmask 7168
    %582 = vst.msk [vmem:[%s11] sm:$0xff] %vm581, %v580
    // Predicated region
    $region54: #{critic_forward.1} parent=1 // pred_check
      _
    $region55: #{critic_forward.1} parent=1 // pred_check_branch
      %584 = sbr.rel (0) target = $region57
    $region56: #{critic_forward.1} parent=1 // pred_region
      _
    $region57: #{critic_forward.1} parent=1 // pred_fallthru
      _
    // Predicated region
    $region58: #{critic_forward.1} parent=1 // pred_check
      _
    $region59: #{critic_forward.1} parent=1 // pred_check_branch
      %586 = sbr.rel (0) target = $region61
    $region60: #{critic_forward.1} parent=1 // pred_region
      _
    $region61: #{critic_forward.1} parent=1 // pred_fallthru
      _
    %587 = vsyncpa [#allocation4], 1
    %588 = vsyncpa [#allocation6], 1

</llo_original>
